<compile_context>
chip_gen: v7x
topology: tpu7x:2x2x1
jax: 0.10.0
libtpu: 0.0.40
codegen_flags: <defaults>
</compile_context>

<pallas_src>
import functools

import jax
import jax.numpy as jnp
from jax.experimental import pallas as pl
from jax.experimental.pallas import tpu as pltpu

DELTA_3 = 1.2        # opt has no 'delta' -> default 1.2
NORM_EPS = 1e-5      # F.normalize(eps=1e-05)


def _round_up(x, m):
    return ((x + m - 1) // m) * m


def _vmem_cap_bytes():
    """90% of physical per-core VMEM, with a conservative fallback (safe on v7x)."""
    try:
        return int(pltpu.get_tpu_info().vmem_capacity_bytes * 0.9)
    except Exception:
        return 48 << 20


def predictor_kernel(reps_ref, w_emb_ref, w_lin_ref, b_lin_ref, o_ref,
                     *, chunk_n, num_chunks, delta_3):
    """One grid step: a (tm,) batch slab against the resident (dim, n_pad) weights.

    Two static passes over the item axis in `chunk_n`-wide lane chunks so only
    (tm, chunk_n) slabs are live (never the full (tm, n_pad)):
      pass 1: accumulate per-row sum-of-squares for s1/s2/s3
      pass 2: recompute each chunk, apply folded rsqrt scales, tanh, store.
    """
    tm = reps_ref.shape[1]
    cdt = w_emb_ref.dtype                       # matmul input dtype (f32 or bf16)

    seq = reps_ref[0].astype(cdt)               # (tm, dim)
    gra = reps_ref[1].astype(cdt)
    gra2 = reps_ref[2].astype(cdt)

    def chunk_scores(c):
        off = c * chunk_n                       # static Python offset
        we = w_emb_ref[:, pl.ds(off, chunk_n)]
        wl = w_lin_ref[:, pl.ds(off, chunk_n)]
        bl = b_lin_ref[:, pl.ds(off, chunk_n)]  # (1, chunk_n) f32
        s1 = jnp.dot(seq, we, preferred_element_type=jnp.float32)
        s2 = jnp.dot(gra, we, preferred_element_type=jnp.float32)
        s3 = jnp.dot(gra2, wl, preferred_element_type=jnp.float32) + bl
        return s1, s2, s3

    # Pass 1: per-row sum of squares, chunked over the item axis.
    ss1 = jnp.zeros((tm, 1), jnp.float32)
    ss2 = jnp.zeros((tm, 1), jnp.float32)
    ss3 = jnp.zeros((tm, 1), jnp.float32)
    for c in range(num_chunks):
        s1, s2, s3 = chunk_scores(c)
        ss1 = ss1 + jnp.sum(s1 * s1, axis=-1, keepdims=True)
        ss2 = ss2 + jnp.sum(s2 * s2, axis=-1, keepdims=True)
        ss3 = ss3 + jnp.sum(s3 * s3, axis=-1, keepdims=True)

    # torch F.normalize: x / max(||x||, eps) == x * rsqrt(max(sumsq, eps^2)).
    eps2 = NORM_EPS * NORM_EPS
    inv1 = jax.lax.rsqrt(jnp.maximum(ss1, eps2))
    inv2 = jax.lax.rsqrt(jnp.maximum(ss2, eps2))
    inv3 = delta_3 * jax.lax.rsqrt(jnp.maximum(ss3, eps2))   # delta_3 folded in

    # Pass 2: recompute, scale, tanh, store lane-dense chunk of the output tile.
    for c in range(num_chunks):
        s1, s2, s3 = chunk_scores(c)
        out = s1 * inv1 + s2 * inv2 + s3 * inv3
        o_ref[:, pl.ds(c * chunk_n, chunk_n)] = jnp.tanh(out).astype(o_ref.dtype)


def prepare_predictor_params(embeddings, lin_w, lin_b, *,
                             weights_dtype=jnp.float32, max_chunks=16, lane=128):
    """One-time parameter preparation (call at parameter-load time, NOT per forward).

    Slices/transposes into MXU-RHS (dim, N) layout, pads the item axis up to a
    multiple of the in-kernel chunk width (lane-dense, uniform chunks), and
    optionally casts the weights to bf16 (bias stays f32).
    Zero-padded columns contribute nothing to the row norms and are sliced off
    in the wrapper, so the math is unchanged.
    """
    n_items, dim = lin_w.shape

    # Chunk width: lane-dense, bounded static unroll depth.
    n128 = _round_up(max(n_items, 1), lane)
    chunk_n = min(n128, 2048)
    if -(-n128 // chunk_n) > max_chunks:
        chunk_n = _round_up(-(-n128 // max_chunks), lane)
    n_pad = _round_up(n128, chunk_n)
    pad = n_pad - n_items

    # embeddings.T[:, 1:]  ==  embeddings[1:, :].T   -> (dim, n_items)
    w_emb = jnp.transpose(embeddings[1:, :]).astype(weights_dtype)
    w_lin = jnp.transpose(lin_w).astype(weights_dtype)      # nn.Linear W.T
    b_lin = lin_b.reshape(1, n_items).astype(jnp.float32)   # 2-D for TPU layout

    if pad:
        w_emb = jnp.pad(w_emb, ((0, 0), (0, pad)))
        w_lin = jnp.pad(w_lin, ((0, 0), (0, pad)))
        b_lin = jnp.pad(b_lin, ((0, 0), (0, pad)))
    return w_emb, w_lin, b_lin, n_items, chunk_n


def predictor_forward(user_seq_rep, user_gra_rep, user_gra2_rep,
                      w_emb, w_lin, b_lin, *, n_items, chunk_n,
                      tm=128, out_dtype=jnp.float32):
    """Pallas forward, tiled over the batch axis only (jit-friendly)."""
    B, dim = user_seq_rep.shape
    n_pad = w_emb.shape[1]
    num_chunks = n_pad // chunk_n
    w_bytes = jnp.dtype(w_emb.dtype).itemsize
    o_bytes = jnp.dtype(out_dtype).itemsize

    cap = _vmem_cap_bytes()
    # Tile-size-independent residency: double-buffered weights + f32 bias.
    fixed = 2 * (2 * dim * n_pad * w_bytes + n_pad * 4)

    def tile_bytes(t):
        reps = 2 * (3 * t * dim * 4)        # double-buffered packed reps tile
        out = 2 * (t * n_pad * o_bytes)     # double-buffered output tile
        live = 8 * t * chunk_n * 4          # in-kernel chunk slabs + temps
        return reps + out + live

    headroom = 6 << 20
    # MXU-native 128-row tile when possible; shrink if the footprint won't fit
    # (handles v7x's 64 MiB VMEM and large item catalogs).
    tm_eff = min(tm, _round_up(B, 8))
    while tm_eff > 8 and fixed + tile_bytes(tm_eff) + headroom > cap:
        tm_eff = max(8, _round_up(tm_eff // 2, 8))

    b_pad = _round_up(B, tm_eff)
    if b_pad != B:
        p = ((0, b_pad - B), (0, 0))
        user_seq_rep = jnp.pad(user_seq_rep, p)
        user_gra_rep = jnp.pad(user_gra_rep, p)
        user_gra2_rep = jnp.pad(user_gra2_rep, p)
    # Pack the three user reps -> one per-step input DMA, no in-kernel concat.
    reps = jnp.stack([user_seq_rep, user_gra_rep, user_gra2_rep], axis=0)

    vmem_limit = min(max(fixed + tile_bytes(tm_eff) + headroom, 32 << 20), cap)

    kernel = functools.partial(predictor_kernel, chunk_n=chunk_n,
                               num_chunks=num_chunks, delta_3=DELTA_3)
    out = pl.pallas_call(
        kernel,
        out_shape=jax.ShapeDtypeStruct((b_pad, n_pad), out_dtype),
        grid_spec=pltpu.PrefetchScalarGridSpec(
            num_scalar_prefetch=0,
            grid=(b_pad // tm_eff,),
            in_specs=[
                pl.BlockSpec((3, tm_eff, dim), lambda i: (0, i, 0)),   # packed reps
                pl.BlockSpec((dim, n_pad), lambda i: (0, 0)),          # emb.T[:,1:]
                pl.BlockSpec((dim, n_pad), lambda i: (0, 0)),          # linear W.T
                pl.BlockSpec((1, n_pad), lambda i: (0, 0)),            # linear bias
            ],
            out_specs=pl.BlockSpec((tm_eff, n_pad), lambda i: (i, 0)),
        ),
        compiler_params=pltpu.CompilerParams(
            dimension_semantics=("parallel",),
            vmem_limit_bytes=vmem_limit),
    )(reps, w_emb, w_lin, b_lin)

    return out[:B, :n_items]


def predictor_reference(user_seq_rep, embeddings, user_gra_rep, user_gra2_rep,
                        lin_w, lin_b):
    def norm(x):
        return x / jnp.maximum(jnp.linalg.norm(x, axis=-1, keepdims=True), NORM_EPS)
    w_emb = embeddings.T[:, 1:]
    s1 = norm(user_seq_rep @ w_emb)
    s2 = norm(user_gra_rep @ w_emb)
    s3 = norm(user_gra2_rep @ lin_w.T + lin_b) * DELTA_3
    return jnp.tanh(s1 + s2 + s3)


if __name__ == "__main__":
    # Small, deterministic synthetic setup; B and N_ITEMS deliberately NOT
    # multiples of the tile sizes so the padding/slicing paths are exercised.
    B, DIM, N_ITEMS = 20, 32, 100
    key = jax.random.PRNGKey(0)
    k1, k2, k3, k4, k5, k6 = jax.random.split(key, 6)

    user_seq_rep = jax.random.normal(k1, (B, DIM), dtype=jnp.float32)
    user_gra_rep = jax.random.normal(k2, (B, DIM), dtype=jnp.float32)
    user_gra2_rep = jax.random.normal(k3, (B, DIM), dtype=jnp.float32)
    embeddings = jax.random.normal(k4, (N_ITEMS + 1, DIM), dtype=jnp.float32)

    # nn.Linear(dim, ITEM_NUMBER): weight (N_ITEMS, DIM) xavier_uniform, bias uniform.
    lin_w = jax.nn.initializers.glorot_uniform()(k5, (N_ITEMS, DIM), jnp.float32)
    bound = 1.0 / (DIM ** 0.5)
    lin_b = jax.random.uniform(k6, (N_ITEMS,), jnp.float32, -bound, bound)

    ref = predictor_reference(user_seq_rep, embeddings, user_gra_rep,
                              user_gra2_rep, lin_w, lin_b)

    fwd = jax.jit(predictor_forward,
                  static_argnames=("n_items", "chunk_n", "tm", "out_dtype"))

    # --- f32 weights: bit-for-bit-ish vs reference (1e-5 tolerance). ---
    w_emb, w_lin, b_lin, n_items, chunk_n = prepare_predictor_params(
        embeddings, lin_w, lin_b)
    out = fwd(user_seq_rep, user_gra_rep, user_gra2_rep,
              w_emb, w_lin, b_lin, n_items=n_items, chunk_n=chunk_n)
    out = jax.block_until_ready(out)
    assert out.shape == (B, N_ITEMS)
    assert jnp.allclose(out, ref, atol=1e-5, rtol=1e-5), "f32 mismatch vs reference"

    # --- bf16 weights: halves resident weight VMEM / HBM read; relaxed tol. ---
    w_emb16, w_lin16, b_lin16, n_items, chunk_n = prepare_predictor_params(
        embeddings, lin_w, lin_b, weights_dtype=jnp.bfloat16)
    out16 = fwd(user_seq_rep, user_gra_rep, user_gra2_rep,
                w_emb16, w_lin16, b_lin16, n_items=n_items, chunk_n=chunk_n)
    out16 = jax.block_until_ready(out16)
    assert out16.shape == (B, N_ITEMS)
    assert jnp.allclose(out16, ref, atol=5e-2), "bf16 mismatch vs reference"

    print("KERNEL_OK")
</pallas_src>

<mosaic_0001>
module attributes {stable_mosaic.version = 11 : i64} {
  func.func @predictor_kernel(%arg0: i32, %arg1: memref<3x24x32xf32, #tpu.memory_space<vmem>>, %arg2: memref<32x128xf32, #tpu.memory_space<vmem>>, %arg3: memref<32x128xf32, #tpu.memory_space<vmem>>, %arg4: memref<1x128xf32, #tpu.memory_space<vmem>>, %arg5: memref<24x128xf32, #tpu.memory_space<vmem>>) attributes {dimension_semantics = [#tpu.dimension_semantics<parallel>], iteration_bounds = array<i64: 1>, scalar_prefetch = 0 : i64, scratch_operands = 0 : i64, tpu.core_type = #tpu.core_type<tc>, window_params = [{transform_indices = @transform_0, window_bounds = array<i64: 3, 24, 32>}, {pipeline_mode = #tpu.pipeline_mode<synchronous>, transform_indices = @transform_1, window_bounds = array<i64: 32, 128>}, {pipeline_mode = #tpu.pipeline_mode<synchronous>, transform_indices = @transform_2, window_bounds = array<i64: 32, 128>}, {pipeline_mode = #tpu.pipeline_mode<synchronous>, transform_indices = @transform_3, window_bounds = array<i64: 1, 128>}, {transform_indices = @transform_4, window_bounds = array<i64: 24, 128>}]} {
    %c0 = arith.constant 0 : index
    %c0_0 = arith.constant 0 : index
    %c0_1 = arith.constant 0 : index
    %0 = vector.load %arg1[%c0, %c0_0, %c0_1] : memref<3x24x32xf32, #tpu.memory_space<vmem>>, vector<1x24x32xf32>
    %1 = vector.shape_cast %0 : vector<1x24x32xf32> to vector<24x32xf32>
    %c1 = arith.constant 1 : index
    %c0_2 = arith.constant 0 : index
    %c0_3 = arith.constant 0 : index
    %2 = vector.load %arg1[%c1, %c0_2, %c0_3] : memref<3x24x32xf32, #tpu.memory_space<vmem>>, vector<1x24x32xf32>
    %3 = vector.shape_cast %2 : vector<1x24x32xf32> to vector<24x32xf32>
    %c2 = arith.constant 2 : index
    %c0_4 = arith.constant 0 : index
    %c0_5 = arith.constant 0 : index
    %4 = vector.load %arg1[%c2, %c0_4, %c0_5] : memref<3x24x32xf32, #tpu.memory_space<vmem>>, vector<1x24x32xf32>
    %5 = vector.shape_cast %4 : vector<1x24x32xf32> to vector<24x32xf32>
    %cst = arith.constant 0.000000e+00 : f32
    %6 = vector.broadcast %cst : f32 to vector<24x1xf32>
    %cst_6 = arith.constant 0.000000e+00 : f32
    %7 = vector.broadcast %cst_6 : f32 to vector<24x1xf32>
    %cst_7 = arith.constant 0.000000e+00 : f32
    %8 = vector.broadcast %cst_7 : f32 to vector<24x1xf32>
    %c0_8 = arith.constant 0 : index
    %c0_9 = arith.constant 0 : index
    %9 = vector.load %arg2[%c0_8, %c0_9] : memref<32x128xf32, #tpu.memory_space<vmem>>, vector<32x128xf32>
    %c0_10 = arith.constant 0 : index
    %c0_11 = arith.constant 0 : index
    %10 = vector.load %arg3[%c0_10, %c0_11] : memref<32x128xf32, #tpu.memory_space<vmem>>, vector<32x128xf32>
    %c0_12 = arith.constant 0 : index
    %c0_13 = arith.constant 0 : index
    %11 = vector.load %arg4[%c0_12, %c0_13] : memref<1x128xf32, #tpu.memory_space<vmem>>, vector<1x128xf32>
    %cst_14 = arith.constant dense<0.000000e+00> : vector<24x128xf32>
    %12 = tpu.matmul %1, %9, %cst_14 {dimension_numbers = #tpu.dot_dimension_numbers<[1], [0], [0], [1], [0, 0, 1, 1], [], []>} : vector<24x32xf32>, vector<32x128xf32>, vector<24x128xf32> -> vector<24x128xf32>
    %cst_15 = arith.constant dense<0.000000e+00> : vector<24x128xf32>
    %13 = tpu.matmul %3, %9, %cst_15 {dimension_numbers = #tpu.dot_dimension_numbers<[1], [0], [0], [1], [0, 0, 1, 1], [], []>} : vector<24x32xf32>, vector<32x128xf32>, vector<24x128xf32> -> vector<24x128xf32>
    %cst_16 = arith.constant dense<0.000000e+00> : vector<24x128xf32>
    %14 = tpu.matmul %5, %10, %cst_16 {dimension_numbers = #tpu.dot_dimension_numbers<[1], [0], [0], [1], [0, 0, 1, 1], [], []>} : vector<24x32xf32>, vector<32x128xf32>, vector<24x128xf32> -> vector<24x128xf32>
    %15 = vector.broadcast %11 : vector<1x128xf32> to vector<24x128xf32>
    %16 = arith.addf %14, %15 : vector<24x128xf32>
    %17 = arith.mulf %12, %12 : vector<24x128xf32>
    %cst_17 = arith.constant dense<0.000000e+00> : vector<24xf32>
    %18 = vector.multi_reduction <add>, %17, %cst_17 [1] : vector<24x128xf32> to vector<24xf32>
    %19 = vector.shape_cast %18 : vector<24xf32> to vector<24x1xf32>
    %20 = arith.addf %6, %19 : vector<24x1xf32>
    %21 = arith.mulf %13, %13 : vector<24x128xf32>
    %cst_18 = arith.constant dense<0.000000e+00> : vector<24xf32>
    %22 = vector.multi_reduction <add>, %21, %cst_18 [1] : vector<24x128xf32> to vector<24xf32>
    %23 = vector.shape_cast %22 : vector<24xf32> to vector<24x1xf32>
    %24 = arith.addf %7, %23 : vector<24x1xf32>
    %25 = arith.mulf %16, %16 : vector<24x128xf32>
    %cst_19 = arith.constant dense<0.000000e+00> : vector<24xf32>
    %26 = vector.multi_reduction <add>, %25, %cst_19 [1] : vector<24x128xf32> to vector<24xf32>
    %27 = vector.shape_cast %26 : vector<24xf32> to vector<24x1xf32>
    %28 = arith.addf %8, %27 : vector<24x1xf32>
    %cst_20 = arith.constant 1.000000e-10 : f32
    %29 = vector.broadcast %cst_20 : f32 to vector<24x1xf32>
    %30 = arith.maximumf %20, %29 : vector<24x1xf32>
    %31 = math.rsqrt %30 : vector<24x1xf32>
    %cst_21 = arith.constant 1.000000e-10 : f32
    %32 = vector.broadcast %cst_21 : f32 to vector<24x1xf32>
    %33 = arith.maximumf %24, %32 : vector<24x1xf32>
    %34 = math.rsqrt %33 : vector<24x1xf32>
    %cst_22 = arith.constant 1.000000e-10 : f32
    %35 = vector.broadcast %cst_22 : f32 to vector<24x1xf32>
    %36 = arith.maximumf %28, %35 : vector<24x1xf32>
    %37 = math.rsqrt %36 : vector<24x1xf32>
    %cst_23 = arith.constant 1.200000e+00 : f32
    %38 = vector.broadcast %cst_23 : f32 to vector<24x1xf32>
    %39 = arith.mulf %38, %37 : vector<24x1xf32>
    %c0_24 = arith.constant 0 : index
    %c0_25 = arith.constant 0 : index
    %40 = vector.load %arg2[%c0_24, %c0_25] : memref<32x128xf32, #tpu.memory_space<vmem>>, vector<32x128xf32>
    %c0_26 = arith.constant 0 : index
    %c0_27 = arith.constant 0 : index
    %41 = vector.load %arg3[%c0_26, %c0_27] : memref<32x128xf32, #tpu.memory_space<vmem>>, vector<32x128xf32>
    %c0_28 = arith.constant 0 : index
    %c0_29 = arith.constant 0 : index
    %42 = vector.load %arg4[%c0_28, %c0_29] : memref<1x128xf32, #tpu.memory_space<vmem>>, vector<1x128xf32>
    %cst_30 = arith.constant dense<0.000000e+00> : vector<24x128xf32>
    %43 = tpu.matmul %1, %40, %cst_30 {dimension_numbers = #tpu.dot_dimension_numbers<[1], [0], [0], [1], [0, 0, 1, 1], [], []>} : vector<24x32xf32>, vector<32x128xf32>, vector<24x128xf32> -> vector<24x128xf32>
    %cst_31 = arith.constant dense<0.000000e+00> : vector<24x128xf32>
    %44 = tpu.matmul %3, %40, %cst_31 {dimension_numbers = #tpu.dot_dimension_numbers<[1], [0], [0], [1], [0, 0, 1, 1], [], []>} : vector<24x32xf32>, vector<32x128xf32>, vector<24x128xf32> -> vector<24x128xf32>
    %cst_32 = arith.constant dense<0.000000e+00> : vector<24x128xf32>
    %45 = tpu.matmul %5, %41, %cst_32 {dimension_numbers = #tpu.dot_dimension_numbers<[1], [0], [0], [1], [0, 0, 1, 1], [], []>} : vector<24x32xf32>, vector<32x128xf32>, vector<24x128xf32> -> vector<24x128xf32>
    %46 = vector.broadcast %42 : vector<1x128xf32> to vector<24x128xf32>
    %47 = arith.addf %45, %46 : vector<24x128xf32>
    %48 = vector.broadcast %31 : vector<24x1xf32> to vector<24x128xf32>
    %49 = arith.mulf %43, %48 : vector<24x128xf32>
    %50 = vector.broadcast %34 : vector<24x1xf32> to vector<24x128xf32>
    %51 = arith.mulf %44, %50 : vector<24x128xf32>
    %52 = arith.addf %49, %51 : vector<24x128xf32>
    %53 = vector.broadcast %39 : vector<24x1xf32> to vector<24x128xf32>
    %54 = arith.mulf %47, %53 : vector<24x128xf32>
    %55 = arith.addf %52, %54 : vector<24x128xf32>
    %56 = math.tanh %55 : vector<24x128xf32>
    %c0_33 = arith.constant 0 : index
    %c0_34 = arith.constant 0 : index
    %57 = vector.load %arg5[%c0_33, %c0_34] : memref<24x128xf32, #tpu.memory_space<vmem>>, vector<24x128xf32>
    tpu.vector_store %arg5[%c0_33, %c0_34], %56 {strides = array<i32>} : memref<24x128xf32, #tpu.memory_space<vmem>>, vector<24x128xf32>,
    return
  }
  func.func @transform_0(%arg0: i32) -> (i32, i32, i32) {
    %c0_i32 = arith.constant 0 : i32
    %c0_i32_0 = arith.constant 0 : i32
    %c0_i32_1 = arith.constant 0 : i32
    return %c0_i32, %arg0, %c0_i32_0 : i32, i32, i32
  }
  func.func @transform_1(%arg0: i32) -> (i32, i32) {
    %c0_i32 = arith.constant 0 : i32
    %c0_i32_0 = arith.constant 0 : i32
    %c0_i32_1 = arith.constant 0 : i32
    return %c0_i32, %c0_i32_0 : i32, i32
  }
  func.func @transform_2(%arg0: i32) -> (i32, i32) {
    %c0_i32 = arith.constant 0 : i32
    %c0_i32_0 = arith.constant 0 : i32
    %c0_i32_1 = arith.constant 0 : i32
    return %c0_i32, %c0_i32_0 : i32, i32
  }
  func.func @transform_3(%arg0: i32) -> (i32, i32) {
    %c0_i32 = arith.constant 0 : i32
    %c0_i32_0 = arith.constant 0 : i32
    %c0_i32_1 = arith.constant 0 : i32
    return %c0_i32, %c0_i32_0 : i32, i32
  }
  func.func @transform_4(%arg0: i32) -> (i32, i32) {
    %c0_i32 = arith.constant 0 : i32
    %c0_i32_0 = arith.constant 0 : i32
    return %arg0, %c0_i32 : i32, i32
  }
}

</mosaic_0001>

<llo_original>
// kernel: predictor_forward.1
$region0: #{predictor_forward.1}
  #allocation0 [shape = 'u32[]', space=smem, size = 0x4, offset = 0x4, fixed_abs, tag = 'smem constant byte address 0x4 - core index']
  #allocation1 [shape = 'u32[144,128]{1,0:T(1,128)}', space=vmem, size = 0x12000, scoped, tag = 'internal scratch']
  %s0 = inlined_call_operand.vmem [shape: f32[3,24,32], index: 0, kind: input, shape index: {}]
  %s1 = inlined_call_operand.vmem [shape: f32[32,128], index: 1, kind: input, shape index: {}]
  %s2 = inlined_call_operand.vmem [shape: f32[32,128], index: 2, kind: input, shape index: {}]
  %s3 = inlined_call_operand.vmem [shape: f32[1,128], index: 3, kind: input, shape index: {}]
  %s4 = inlined_call_operand.hbm [shape: f32[24,128], index: 4, kind: output, shape index: {}]
  %s5 = sld [smem:[#allocation0]]
  $region26: #{predictor_forward.1} parent=0
    _
  %s7 = ssub.s32 1, %s5
  %s8 = scalar_select 0, %s7, %s5
  $region1: #{predictor_forward.1} parent=0
    #allocation2 [shape = 'u8[12288]{0}', space=vmem, size = 0x3000, scoped, tag = 'output window, operand 0, single buffered']
    #allocation3 [shape = 's32[1]{0}', space=sflag, size = 0x4, scoped, tag = 'scoped memory for predictor_forward.1']
    %9 = vsyncpa [#allocation3], 0
    // Predicated region
    $region2: #{predictor_forward.1} parent=1 // pred_check
      _
    $region3: #{predictor_forward.1} parent=1 // pred_check_branch
      %11 = sbr.rel (0) target = $region5
    $region4: #{predictor_forward.1} parent=1 // pred_region
      _
    $region5: #{predictor_forward.1} parent=1 // pred_fallthru
      _
    // Predicated region
    $region6: #{predictor_forward.1} parent=1 // pred_check
      _
    $region7: #{predictor_forward.1} parent=1 // pred_check_branch
      %13 = sbr.rel (0) target = $region9
    $region8: #{predictor_forward.1} parent=1 // pred_region
      _
    $region9: #{predictor_forward.1} parent=1 // pred_fallthru
      _
    // Predicated region
    $region10: #{predictor_forward.1} parent=1 // pred_check
      _
    $region11: #{predictor_forward.1} parent=1 // pred_check_branch
      %15 = sbr.rel (0) target = $region13
    $region12: #{predictor_forward.1} parent=1 // pred_region
      _
    $region13: #{predictor_forward.1} parent=1 // pred_fallthru
      _
    // Predicated region
    $region14: #{predictor_forward.1} parent=1 // pred_check
      _
    $region15: #{predictor_forward.1} parent=1 // pred_check_branch
      %17 = sbr.rel (0) target = $region17
    $region16: #{predictor_forward.1} parent=1 // pred_region
      _
    $region17: #{predictor_forward.1} parent=1 // pred_fallthru
      _
    %v18 = vld [vmem:[%s0] sm:$0xff]
    %v19 = vld [vmem:[%s0 + $0x8] sm:$0xff]
    %v20 = vld [vmem:[%s0 + $0x10] sm:$0xff]
    %s21 = scalar_lea.vmem %s0, 24
    %v22 = vld [vmem:[%s21] sm:$0xff]
    %v23 = vld [vmem:[%s21 + $0x8] sm:$0xff]
    %v24 = vld [vmem:[%s21 + $0x10] sm:$0xff]
    %s25 = scalar_lea.vmem %s0, 48
    %v26 = vld [vmem:[%s25] sm:$0xff]
    %v27 = vld [vmem:[%s25 + $0x8] sm:$0xff]
    %v28 = vld [vmem:[%s25 + $0x10] sm:$0xff]
    %v29 = vld [vmem:[%s1] sm:$0xff]
    %v30 = vld [vmem:[%s1 + $0x8] sm:$0xff]
    %v31 = vld [vmem:[%s1 + $0x10] sm:$0xff]
    %v32 = vld [vmem:[%s1 + $0x18] sm:$0xff]
    %v33 = vld [vmem:[%s2] sm:$0xff]
    %v34 = vld [vmem:[%s2 + $0x8] sm:$0xff]
    %v35 = vld [vmem:[%s2 + $0x10] sm:$0xff]
    %v36 = vld [vmem:[%s2 + $0x18] sm:$0xff]
    %v37 = vld [vmem:[%s3] sm:$0x1]
    %vm38 = vcmask 261120
    %v40 = vsel %vm38, %v18, 0
    %v43 = vsel %vm38, %v19, 0
    %v46 = vsel %vm38, %v20, 0
    %48 = vmatprep.subr.mxu0 0.0
    %49 = vmatpush1.msra.mxu0 %v29
    %50 = vmatprep.subr.mxu0 0.0
    %51 = vmatpush1.msra.mxu0 %v30
    %52 = vmatprep.subr.mxu0 0.0
    %53 = vmatpush1.msra.mxu0 %v31
    %54 = vmatprep.subr.mxu0 0.0
    %55 = vmatpush1.msra.mxu0 %v32
    %56 = vmatprep.subr.mxu0 0.0
    %57 = vmatpush1.msra.mxu0 0.0
    %58 = vmatprep.subr.mxu0 0.0
    %59 = vmatpush1.msra.mxu0 0.0
    %60 = vmatprep.subr.mxu0 0.0
    %61 = vmatpush1.msra.mxu0 0.0
    %62 = vmatprep.subr.mxu0 0.0
    %63 = vmatpush1.msra.mxu0 0.0
    %64 = vmatprep.subr.mxu0 0.0
    %65 = vmatpush1.msra.mxu0 0.0
    %66 = vmatprep.subr.mxu0 0.0
    %67 = vmatpush1.msra.mxu0 0.0
    %68 = vmatprep.subr.mxu0 0.0
    %69 = vmatpush1.msra.mxu0 0.0
    %70 = vmatprep.subr.mxu0 0.0
    %71 = vmatpush1.msra.mxu0 0.0
    %72 = vmatprep.subr.mxu0 0.0
    %73 = vmatpush1.msra.mxu0 0.0
    %74 = vmatprep.subr.mxu0 0.0
    %75 = vmatpush1.msra.mxu0 0.0
    %76 = vmatprep.subr.mxu0 0.0
    %77 = vmatpush1.msra.mxu0 0.0
    %78 = vmatprep.subr.mxu0 0.0
    %79 = vmatpush1.msra.mxu0 0.0
    %80 = vmatprep.subr.mxu0 0.0
    %81 = vmatpush1.msra.mxu0 0.0
    %82 = vmatprep.subr.mxu0 0.0
    %83 = vmatpush1.msra.mxu0 0.0
    %84 = vmatprep.subr.mxu0 0.0
    %85 = vmatpush1.msra.mxu0 0.0
    %86 = vmatprep.subr.mxu0 0.0
    %87 = vmatpush1.msra.mxu0 0.0
    %88 = vmatprep.subr.mxu0 0.0
    %89 = vmatpush1.msra.mxu0 0.0
    %90 = vmatprep.subr.mxu0 0.0
    %91 = vmatpush1.msra.mxu0 0.0
    %92 = vmatprep.subr.mxu0 0.0
    %93 = vmatpush1.msra.mxu0 0.0
    %94 = vmatprep.subr.mxu0 0.0
    %95 = vmatpush1.msra.mxu0 0.0
    %96 = vmatprep.subr.mxu0 0.0
    %97 = vmatpush1.msra.mxu0 0.0
    %98 = vmatprep.subr.mxu0 0.0
    %99 = vmatpush1.msra.mxu0 0.0
    %100 = vmatprep.subr.mxu0 0.0
    %101 = vmatpush1.msra.mxu0 0.0
    %102 = vmatprep.subr.mxu0 0.0
    %103 = vmatpush1.msra.mxu0 0.0
    %104 = vmatprep.subr.mxu0 0.0
    %105 = vmatpush1.msra.mxu0 0.0
    %106 = vmatprep.subr.mxu0 0.0
    %107 = vmatpush1.msra.mxu0 0.0
    %108 = vmatprep.subr.mxu0 0.0
    %109 = vmatpush1.msra.mxu0 0.0
    %110 = vmatprep.subr.mxu0 0.0
    %111 = vmatpush1.msra.mxu0 0.0
    %112 = vmatprep.mubr.f32.mxu0 0.0
    %113 = vmatmul.mubr.f32.gmra.mrb[0].mxu0 %v40
    %v114 = vpop.f32.mrb[0].mxu0
    %v115 = vadd.f32 0.0, %v114
    %v116 = vpop.f32.mrb[0].mxu0
    %117 = vmatprep.mubr.f32.mxu0 0.0
    %118 = vmatmul.mubr.f32.gmra.mrb[0].mxu0 %v43
    %v119 = vpop.f32.mrb[0].mxu0
    %v120 = vadd.f32 0.0, %v119
    %v121 = vpop.f32.mrb[0].mxu0
    %122 = vmatprep.mubr.f32.mxu0 0.0
    %123 = vmatmul.mubr.f32.gmra.mrb[0].mxu0 %v46
    %v124 = vpop.f32.mrb[0].mxu0
    %v125 = vadd.f32 0.0, %v124
    %v126 = vpop.f32.mrb[0].mxu0
    %127 = vdwg.mxu0
    %v129 = vsel %vm38, %v22, 0
    %v132 = vsel %vm38, %v23, 0
    %v135 = vsel %vm38, %v24, 0
    %137 = vmatprep.subr.mxu0 0.0
    %138 = vmatpush1.msra.mxu0 %v29
    %139 = vmatprep.subr.mxu0 0.0
    %140 = vmatpush1.msra.mxu0 %v30
    %141 = vmatprep.subr.mxu0 0.0
    %142 = vmatpush1.msra.mxu0 %v31
    %143 = vmatprep.subr.mxu0 0.0
    %144 = vmatpush1.msra.mxu0 %v32
    %145 = vmatprep.subr.mxu0 0.0
    %146 = vmatpush1.msra.mxu0 0.0
    %147 = vmatprep.subr.mxu0 0.0
    %148 = vmatpush1.msra.mxu0 0.0
    %149 = vmatprep.subr.mxu0 0.0
    %150 = vmatpush1.msra.mxu0 0.0
    %151 = vmatprep.subr.mxu0 0.0
    %152 = vmatpush1.msra.mxu0 0.0
    %153 = vmatprep.subr.mxu0 0.0
    %154 = vmatpush1.msra.mxu0 0.0
    %155 = vmatprep.subr.mxu0 0.0
    %156 = vmatpush1.msra.mxu0 0.0
    %157 = vmatprep.subr.mxu0 0.0
    %158 = vmatpush1.msra.mxu0 0.0
    %159 = vmatprep.subr.mxu0 0.0
    %160 = vmatpush1.msra.mxu0 0.0
    %161 = vmatprep.subr.mxu0 0.0
    %162 = vmatpush1.msra.mxu0 0.0
    %163 = vmatprep.subr.mxu0 0.0
    %164 = vmatpush1.msra.mxu0 0.0
    %165 = vmatprep.subr.mxu0 0.0
    %166 = vmatpush1.msra.mxu0 0.0
    %167 = vmatprep.subr.mxu0 0.0
    %168 = vmatpush1.msra.mxu0 0.0
    %169 = vmatprep.subr.mxu0 0.0
    %170 = vmatpush1.msra.mxu0 0.0
    %171 = vmatprep.subr.mxu0 0.0
    %172 = vmatpush1.msra.mxu0 0.0
    %173 = vmatprep.subr.mxu0 0.0
    %174 = vmatpush1.msra.mxu0 0.0
    %175 = vmatprep.subr.mxu0 0.0
    %176 = vmatpush1.msra.mxu0 0.0
    %177 = vmatprep.subr.mxu0 0.0
    %178 = vmatpush1.msra.mxu0 0.0
    %179 = vmatprep.subr.mxu0 0.0
    %180 = vmatpush1.msra.mxu0 0.0
    %181 = vmatprep.subr.mxu0 0.0
    %182 = vmatpush1.msra.mxu0 0.0
    %183 = vmatprep.subr.mxu0 0.0
    %184 = vmatpush1.msra.mxu0 0.0
    %185 = vmatprep.subr.mxu0 0.0
    %186 = vmatpush1.msra.mxu0 0.0
    %187 = vmatprep.subr.mxu0 0.0
    %188 = vmatpush1.msra.mxu0 0.0
    %189 = vmatprep.subr.mxu0 0.0
    %190 = vmatpush1.msra.mxu0 0.0
    %191 = vmatprep.subr.mxu0 0.0
    %192 = vmatpush1.msra.mxu0 0.0
    %193 = vmatprep.subr.mxu0 0.0
    %194 = vmatpush1.msra.mxu0 0.0
    %195 = vmatprep.subr.mxu0 0.0
    %196 = vmatpush1.msra.mxu0 0.0
    %197 = vmatprep.subr.mxu0 0.0
    %198 = vmatpush1.msra.mxu0 0.0
    %199 = vmatprep.subr.mxu0 0.0
    %200 = vmatpush1.msra.mxu0 0.0
    %201 = vmatprep.mubr.f32.mxu0 0.0
    %202 = vmatmul.mubr.f32.gmra.mrb[0].mxu0 %v129
    %v203 = vpop.f32.mrb[0].mxu0
    %v204 = vadd.f32 0.0, %v203
    %v205 = vpop.f32.mrb[0].mxu0
    %206 = vmatprep.mubr.f32.mxu0 0.0
    %207 = vmatmul.mubr.f32.gmra.mrb[0].mxu0 %v132
    %v208 = vpop.f32.mrb[0].mxu0
    %v209 = vadd.f32 0.0, %v208
    %v210 = vpop.f32.mrb[0].mxu0
    %211 = vmatprep.mubr.f32.mxu0 0.0
    %212 = vmatmul.mubr.f32.gmra.mrb[0].mxu0 %v135
    %v213 = vpop.f32.mrb[0].mxu0
    %v214 = vadd.f32 0.0, %v213
    %v215 = vpop.f32.mrb[0].mxu0
    %216 = vdwg.mxu0
    %v218 = vlaneseq
    %v219 = vshrl.u32 %v218, 7
    %v220 = vsub.s32 0, %v219
    %v221 = vrot.slane %v37, %v220
    %v224 = vsel %vm38, %v26, 0
    %v227 = vsel %vm38, %v27, 0
    %v230 = vsel %vm38, %v28, 0
    %232 = vmatprep.subr.mxu0 0.0
    %233 = vmatpush1.msra.mxu0 %v33
    %234 = vmatprep.subr.mxu0 0.0
    %235 = vmatpush1.msra.mxu0 %v34
    %236 = vmatprep.subr.mxu0 0.0
    %237 = vmatpush1.msra.mxu0 %v35
    %238 = vmatprep.subr.mxu0 0.0
    %239 = vmatpush1.msra.mxu0 %v36
    %240 = vmatprep.subr.mxu0 0.0
    %241 = vmatpush1.msra.mxu0 0.0
    %242 = vmatprep.subr.mxu0 0.0
    %243 = vmatpush1.msra.mxu0 0.0
    %244 = vmatprep.subr.mxu0 0.0
    %245 = vmatpush1.msra.mxu0 0.0
    %246 = vmatprep.subr.mxu0 0.0
    %247 = vmatpush1.msra.mxu0 0.0
    %248 = vmatprep.subr.mxu0 0.0
    %249 = vmatpush1.msra.mxu0 0.0
    %250 = vmatprep.subr.mxu0 0.0
    %251 = vmatpush1.msra.mxu0 0.0
    %252 = vmatprep.subr.mxu0 0.0
    %253 = vmatpush1.msra.mxu0 0.0
    %254 = vmatprep.subr.mxu0 0.0
    %255 = vmatpush1.msra.mxu0 0.0
    %256 = vmatprep.subr.mxu0 0.0
    %257 = vmatpush1.msra.mxu0 0.0
    %258 = vmatprep.subr.mxu0 0.0
    %259 = vmatpush1.msra.mxu0 0.0
    %260 = vmatprep.subr.mxu0 0.0
    %261 = vmatpush1.msra.mxu0 0.0
    %262 = vmatprep.subr.mxu0 0.0
    %263 = vmatpush1.msra.mxu0 0.0
    %264 = vmatprep.subr.mxu0 0.0
    %265 = vmatpush1.msra.mxu0 0.0
    %266 = vmatprep.subr.mxu0 0.0
    %267 = vmatpush1.msra.mxu0 0.0
    %268 = vmatprep.subr.mxu0 0.0
    %269 = vmatpush1.msra.mxu0 0.0
    %270 = vmatprep.subr.mxu0 0.0
    %271 = vmatpush1.msra.mxu0 0.0
    %272 = vmatprep.subr.mxu0 0.0
    %273 = vmatpush1.msra.mxu0 0.0
    %274 = vmatprep.subr.mxu0 0.0
    %275 = vmatpush1.msra.mxu0 0.0
    %276 = vmatprep.subr.mxu0 0.0
    %277 = vmatpush1.msra.mxu0 0.0
    %278 = vmatprep.subr.mxu0 0.0
    %279 = vmatpush1.msra.mxu0 0.0
    %280 = vmatprep.subr.mxu0 0.0
    %281 = vmatpush1.msra.mxu0 0.0
    %282 = vmatprep.subr.mxu0 0.0
    %283 = vmatpush1.msra.mxu0 0.0
    %284 = vmatprep.subr.mxu0 0.0
    %285 = vmatpush1.msra.mxu0 0.0
    %286 = vmatprep.subr.mxu0 0.0
    %287 = vmatpush1.msra.mxu0 0.0
    %288 = vmatprep.subr.mxu0 0.0
    %289 = vmatpush1.msra.mxu0 0.0
    %290 = vmatprep.subr.mxu0 0.0
    %291 = vmatpush1.msra.mxu0 0.0
    %292 = vmatprep.subr.mxu0 0.0
    %293 = vmatpush1.msra.mxu0 0.0
    %294 = vmatprep.subr.mxu0 0.0
    %295 = vmatpush1.msra.mxu0 0.0
    %296 = vmatprep.mubr.f32.mxu0 0.0
    %297 = vmatmul.mubr.f32.gmra.mrb[0].mxu0 %v224
    %v298 = vpop.f32.mrb[0].mxu0
    %v299 = vadd.f32 %v221, %v298
    %v300 = vpop.f32.mrb[0].mxu0
    %301 = vmatprep.mubr.f32.mxu0 0.0
    %302 = vmatmul.mubr.f32.gmra.mrb[0].mxu0 %v227
    %v303 = vpop.f32.mrb[0].mxu0
    %v304 = vadd.f32 %v221, %v303
    %v305 = vpop.f32.mrb[0].mxu0
    %306 = vmatprep.mubr.f32.mxu0 0.0
    %307 = vmatmul.mubr.f32.gmra.mrb[0].mxu0 %v230
    %v308 = vpop.f32.mrb[0].mxu0
    %v309 = vadd.f32 %v221, %v308
    %v310 = vpop.f32.mrb[0].mxu0
    %311 = vdwg.mxu0
    %v312 = vmul.f32 %v115, %v115
    %v313 = vmul.f32 %v120, %v120
    %v314 = vmul.f32 %v125, %v125
    %315 = vadd.xlane.f32.xlu0 %v312
    %v316 = vpop.xlane.xlu0 %315
    %317 = vadd.xlane.f32.xlu0 %v313
    %v318 = vpop.xlane.xlu0 %317
    %319 = vadd.xlane.f32.xlu0 %v314
    %v320 = vpop.xlane.xlu0 %319
    %v321 = vadd.f32 %v316, 0.0
    %v322 = vadd.f32 %v318, 0.0
    %v323 = vadd.f32 %v320, 0.0
    %v324 = vmul.f32 %v204, %v204
    %v325 = vmul.f32 %v209, %v209
    %v326 = vmul.f32 %v214, %v214
    %327 = vadd.xlane.f32.xlu0 %v324
    %v328 = vpop.xlane.xlu0 %327
    %329 = vadd.xlane.f32.xlu0 %v325
    %v330 = vpop.xlane.xlu0 %329
    %331 = vadd.xlane.f32.xlu0 %v326
    %v332 = vpop.xlane.xlu0 %331
    %v333 = vadd.f32 %v328, 0.0
    %v334 = vadd.f32 %v330, 0.0
    %v335 = vadd.f32 %v332, 0.0
    %v336 = vmul.f32 %v299, %v299
    %v337 = vmul.f32 %v304, %v304
    %v338 = vmul.f32 %v309, %v309
    %339 = vadd.xlane.f32.xlu0 %v336
    %v340 = vpop.xlane.xlu0 %339
    %341 = vadd.xlane.f32.xlu0 %v337
    %v342 = vpop.xlane.xlu0 %341
    %343 = vadd.xlane.f32.xlu0 %v338
    %v344 = vpop.xlane.xlu0 %343
    %v345 = vadd.f32 %v340, 0.0
    %v346 = vadd.f32 %v342, 0.0
    %v347 = vadd.f32 %v344, 0.0
    %v348 = vmax.f32 %v321, 1e-10
    %v349 = vmax.f32 %v322, 1e-10
    %v350 = vmax.f32 %v323, 1e-10
    %v351 = vrsqrt.pop %v348
    %v352 = vrsqrt.pop %v349
    %v353 = vrsqrt.pop %v350
    %v354 = vmax.f32 %v333, 1e-10
    %v355 = vmax.f32 %v334, 1e-10
    %v356 = vmax.f32 %v335, 1e-10
    %v357 = vrsqrt.pop %v354
    %v358 = vrsqrt.pop %v355
    %v359 = vrsqrt.pop %v356
    %v360 = vmax.f32 %v345, 1e-10
    %v361 = vmax.f32 %v346, 1e-10
    %v362 = vmax.f32 %v347, 1e-10
    %v363 = vrsqrt.pop %v360
    %v364 = vrsqrt.pop %v361
    %v365 = vrsqrt.pop %v362
    %v366 = vmul.f32 %v363, 1.2
    %v367 = vmul.f32 %v364, 1.2
    %v368 = vmul.f32 %v365, 1.2
    %v369 = vmul.f32 %v115, %v351
    %v370 = vmul.f32 %v120, %v352
    %v371 = vmul.f32 %v125, %v353
    %v372 = vmul.f32 %v204, %v357
    %v373 = vmul.f32 %v209, %v358
    %v374 = vmul.f32 %v214, %v359
    %v375 = vadd.f32 %v369, %v372
    %v376 = vadd.f32 %v370, %v373
    %v377 = vadd.f32 %v371, %v374
    %v378 = vmul.f32 %v299, %v366
    %v379 = vmul.f32 %v304, %v367
    %v380 = vmul.f32 %v309, %v368
    %v381 = vadd.f32 %v375, %v378
    %v382 = vadd.f32 %v376, %v379
    %v383 = vadd.f32 %v377, %v380
    %v384 = vtanh.pop %v381
    %v385 = vtanh.pop %v382
    %v386 = vtanh.pop %v383
    %387 = vst [vmem:[#allocation2] sm:$0xff] %v384
    %388 = vst [vmem:[#allocation2 + $0x8] sm:$0xff] %v385
    %389 = vst [vmem:[#allocation2 + $0x10] sm:$0xff] %v386
    // Predicated region
    $region18: #{predictor_forward.1} parent=1 // pred_check
      _
    $region19: #{predictor_forward.1} parent=1 // pred_check_branch
      %391 = sbr.rel (0) target = $region21
    $region20: #{predictor_forward.1} parent=1 // pred_region
      %s393 = ssub.s32 384, 384
      %394 = vsyncadd [#allocation3], %s393
      %s395 = sshll.u32 [#allocation2], 4
      %s396 = int_to_ptr.vmem [resolvable:$true] %s395
      %401 = dma.vmem_to_hbm [thread:$0]  %s396, 384, %s4, [#allocation3], 128, 128, 8
    $region21: #{predictor_forward.1} parent=1 // pred_fallthru
      _
    // Predicated region
    $region22: #{predictor_forward.1} parent=1 // pred_check
      _
    $region23: #{predictor_forward.1} parent=1 // pred_check_branch
      %403 = sbr.rel (0) target = $region25
    $region24: #{predictor_forward.1} parent=1 // pred_region
      %404 = dma.done [#allocation3], 384
    $region25: #{predictor_forward.1} parent=1 // pred_fallthru
      _
    %405 = vsyncpa [#allocation3], 1

</llo_original>
